<compile_context>
chip_gen: v7x
topology: tpu7x:2x2x1
jax: 0.10.0
libtpu: 0.0.40
codegen_flags: <defaults>
</compile_context>

<pallas_src>
import functools
import math

import jax
import jax.numpy as jnp
from jax import lax
from jax.experimental import pallas as pl
from jax.experimental.pallas import tpu as pltpu


def mha_kernel(x_ref, wqkv_ref, bqkv_ref, o_ref, *, nums_head, dim_k, dim_v):
    # x block: (1, S, D) -> (S, D).  bf16 MXU operand, fp32 accumulation.
    x = x_ref[0].astype(jnp.bfloat16)

    # Fused Q/K/V projection: one wide MXU matmul; bias added once in fp32.
    qkv = jnp.dot(x, wqkv_ref[...], preferred_element_type=jnp.float32)
    qkv = qkv + bqkv_ref[...]                       # (S, 2*dim_k + dim_v) fp32

    # bf16 copies for the attention matmul operands; softmax stays fp32.
    q = qkv[:, :dim_k].astype(jnp.bfloat16)         # (S, dim_k)
    k = qkv[:, dim_k:2 * dim_k].astype(jnp.bfloat16)
    v = qkv[:, 2 * dim_k:].astype(jnp.bfloat16)     # (S, dim_v)

    dk_h = dim_k // nums_head
    dv_h = dim_v // nums_head

    # Per-head attention (static slices == the PyTorch reshape+permute).
    # Each head's result is written directly into the output tile; no
    # list + concatenate, so nothing stays live across head iterations.
    # TODO(synk): for nums_head >= 8 convert to lax.fori_loop, and for real
    # head dims pad / reorder the fused slab so slices are 128-lane aligned.
    for h in range(nums_head):
        qh = q[:, h * dk_h:(h + 1) * dk_h]          # (S, dk_h) bf16
        kh = k[:, h * dk_h:(h + 1) * dk_h]          # (S, dk_h) bf16
        vh = v[:, h * dv_h:(h + 1) * dv_h]          # (S, dv_h) bf16

        # q @ k^T without materializing a transpose: contract both on last dim.
        s = lax.dot_general(qh, kh, (((1,), (1,)), ((), ())),
                            preferred_element_type=jnp.float32)    # (S, S) f32

        # Numerically stable softmax in fp32; no 1/sqrt(dim_k) scale (matches
        # the PyTorch module, whose _norm_fact is unused in forward()).
        s = s - jnp.max(s, axis=-1, keepdims=True)
        p = jnp.exp(s)
        inv_denom = pl.reciprocal(jnp.sum(p, axis=-1, keepdims=True),
                                  approx=True)
        attn = (p * inv_denom).astype(jnp.bfloat16)

        out_h = jnp.dot(attn, vh, preferred_element_type=jnp.float32)
        # == torch permute(1, 2, 0, 3).reshape(B, S, -1) for this head/batch.
        o_ref[0, :, h * dv_h:(h + 1) * dv_h] = out_h.astype(o_ref.dtype)


def self_attention_multi_head(x, wq, bq, wk, bk, wv, bv, *, nums_head):
    B, S, D = x.shape
    dim_k = wq.shape[1]
    dim_v = wv.shape[1]
    d_qkv = 2 * dim_k + dim_v

    # Fuse the three projections (wrapper-side, pure JAX, done once).
    # Weights in bf16 (MXU operands; halves their DMA/VMEM); bias stays fp32
    # since it is added to the fp32 accumulator inside the kernel.
    wqkv = jnp.concatenate([wq, wk, wv], axis=1).astype(jnp.bfloat16)
    bqkv = jnp.concatenate([bq, bk, bv], axis=1).astype(jnp.float32)

    kernel = functools.partial(
        mha_kernel, nums_head=nums_head, dim_k=dim_k, dim_v=dim_v)

    return pl.pallas_call(
        kernel,
        out_shape=jax.ShapeDtypeStruct((B, S, dim_v), x.dtype),
        grid=(B,),
        in_specs=[
            # x: one batch element per grid step.
            pl.BlockSpec((1, S, D), lambda b: (b, 0, 0)),
            # Fused weights/bias: constant index_map -> resident across grid.
            pl.BlockSpec((D, d_qkv), lambda b: (0, 0)),
            pl.BlockSpec((1, d_qkv), lambda b: (0, 0)),
        ],
        out_specs=pl.BlockSpec((1, S, dim_v), lambda b: (b, 0, 0)),
        compiler_params=pltpu.CompilerParams(
            dimension_semantics=("parallel",),
            vmem_limit_bytes=48 * 1024 * 1024),
    )(x, wqkv, bqkv)


def reference(x, wq, bq, wk, bk, wv, bv, nums_head):
    """Pure-JAX (fp32) mirror of the PyTorch forward (no attention scaling)."""
    B, S, _ = x.shape
    dim_k = wq.shape[1]
    dim_v = wv.shape[1]
    Q = (x @ wq + bq).reshape(B, S, nums_head, dim_k // nums_head).transpose(2, 0, 1, 3)
    K = (x @ wk + bk).reshape(B, S, nums_head, dim_k // nums_head).transpose(2, 0, 1, 3)
    V = (x @ wv + bv).reshape(B, S, nums_head, dim_v // nums_head).transpose(2, 0, 1, 3)
    atten = jax.nn.softmax(jnp.matmul(Q, K.transpose(0, 1, 3, 2)), axis=-1)
    out = jnp.matmul(atten, V).transpose(1, 2, 0, 3).reshape(B, S, -1)
    return out


if __name__ == "__main__":
    # Small shapes consistent with the module: x (B, S, input_dim)
    B, S, input_dim = 2, 8, 32
    dim_k, dim_v, nums_head = 16, 16, 4

    key = jax.random.PRNGKey(0)
    kx, kq, kbq, kk, kbk, kv, kbv = jax.random.split(key, 7)

    x = jax.random.normal(kx, (B, S, input_dim), dtype=jnp.float32)

    # Deterministic nn.Linear-style init (uniform(-1/sqrt(in), 1/sqrt(in))),
    # weights stored as (in_dim, out_dim).
    bound = 1.0 / math.sqrt(input_dim)
    wq = jax.random.uniform(kq, (input_dim, dim_k), jnp.float32, -bound, bound)
    bq = jax.random.uniform(kbq, (1, dim_k), jnp.float32, -bound, bound)
    wk = jax.random.uniform(kk, (input_dim, dim_k), jnp.float32, -bound, bound)
    bk = jax.random.uniform(kbk, (1, dim_k), jnp.float32, -bound, bound)
    wv = jax.random.uniform(kv, (input_dim, dim_v), jnp.float32, -bound, bound)
    bv = jax.random.uniform(kbv, (1, dim_v), jnp.float32, -bound, bound)

    out = self_attention_multi_head(x, wq, bq, wk, bk, wv, bv, nums_head=nums_head)
    out = jax.block_until_ready(out)

    ref = reference(x, wq, bq, wk, bk, wv, bv, nums_head)
    assert out.shape == (B, S, dim_v), out.shape
    # Tolerance widened for bf16 MXU operands + approx reciprocal (fp32 accum).
    err = float(jnp.abs(out - ref).max())
    assert jnp.allclose(out, ref, atol=3e-2, rtol=3e-2), err

    print("KERNEL_OK")
</pallas_src>

<mosaic_0001>
module attributes {stable_mosaic.version = 11 : i64} {
  func.func @mha_kernel(%arg0: i32, %arg1: memref<1x8x32xf32, #tpu.memory_space<vmem>>, %arg2: memref<32x48xbf16, #tpu.memory_space<vmem>>, %arg3: memref<1x48xf32, #tpu.memory_space<vmem>>, %arg4: memref<1x8x16xf32, #tpu.memory_space<vmem>>) attributes {dimension_semantics = [#tpu.dimension_semantics<parallel>], iteration_bounds = array<i64: 2>, scalar_prefetch = 0 : i64, scratch_operands = 0 : i64, tpu.core_type = #tpu.core_type<tc>, window_params = [{transform_indices = @transform_0, window_bounds = array<i64: 1, 8, 32>}, {pipeline_mode = #tpu.pipeline_mode<synchronous>, transform_indices = @transform_1, window_bounds = array<i64: 32, 48>}, {pipeline_mode = #tpu.pipeline_mode<synchronous>, transform_indices = @transform_2, window_bounds = array<i64: 1, 48>}, {transform_indices = @transform_3, window_bounds = array<i64: 1, 8, 16>}]} {
    %c0 = arith.constant 0 : index
    %c0_0 = arith.constant 0 : index
    %c0_1 = arith.constant 0 : index
    %0 = vector.load %arg1[%c0, %c0_0, %c0_1] : memref<1x8x32xf32, #tpu.memory_space<vmem>>, vector<1x8x32xf32>
    %1 = vector.shape_cast %0 : vector<1x8x32xf32> to vector<8x32xf32>
    %2 = arith.truncf %1 : vector<8x32xf32> to vector<8x32xbf16>
    %c0_2 = arith.constant 0 : index
    %c0_3 = arith.constant 0 : index
    %3 = vector.load %arg2[%c0_2, %c0_3] : memref<32x48xbf16, #tpu.memory_space<vmem>>, vector<32x48xbf16>
    %cst = arith.constant dense<0.000000e+00> : vector<8x48xf32>
    %4 = tpu.matmul %2, %3, %cst {dimension_numbers = #tpu.dot_dimension_numbers<[1], [0], [0], [1], [0, 0, 1, 1], [], []>} : vector<8x32xbf16>, vector<32x48xbf16>, vector<8x48xf32> -> vector<8x48xf32>
    %c0_4 = arith.constant 0 : index
    %c0_5 = arith.constant 0 : index
    %5 = vector.load %arg3[%c0_4, %c0_5] : memref<1x48xf32, #tpu.memory_space<vmem>>, vector<1x48xf32>
    %6 = vector.broadcast %5 : vector<1x48xf32> to vector<8x48xf32>
    %7 = arith.addf %4, %6 : vector<8x48xf32>
    %8 = vector.extract_strided_slice %7 {offsets = [0, 0], sizes = [8, 16], strides = [1, 1]} : vector<8x48xf32> to vector<8x16xf32>
    %9 = arith.truncf %8 : vector<8x16xf32> to vector<8x16xbf16>
    %10 = vector.extract_strided_slice %7 {offsets = [0, 16], sizes = [8, 16], strides = [1, 1]} : vector<8x48xf32> to vector<8x16xf32>
    %11 = arith.truncf %10 : vector<8x16xf32> to vector<8x16xbf16>
    %12 = vector.extract_strided_slice %7 {offsets = [0, 32], sizes = [8, 16], strides = [1, 1]} : vector<8x48xf32> to vector<8x16xf32>
    %13 = arith.truncf %12 : vector<8x16xf32> to vector<8x16xbf16>
    %14 = vector.extract_strided_slice %9 {offsets = [0, 0], sizes = [8, 4], strides = [1, 1]} : vector<8x16xbf16> to vector<8x4xbf16>
    %15 = vector.extract_strided_slice %11 {offsets = [0, 0], sizes = [8, 4], strides = [1, 1]} : vector<8x16xbf16> to vector<8x4xbf16>
    %16 = vector.extract_strided_slice %13 {offsets = [0, 0], sizes = [8, 4], strides = [1, 1]} : vector<8x16xbf16> to vector<8x4xbf16>
    %cst_6 = arith.constant dense<0.000000e+00> : vector<8x8xf32>
    %17 = tpu.matmul %14, %15, %cst_6 {dimension_numbers = #tpu.dot_dimension_numbers<[1], [1], [0], [0], [0, 0, 1, 0], [], []>} : vector<8x4xbf16>, vector<8x4xbf16>, vector<8x8xf32> -> vector<8x8xf32>
    %cst_7 = arith.constant dense<0xFF800000> : vector<8xf32>
    %18 = vector.multi_reduction <maximumf>, %17, %cst_7 [1] : vector<8x8xf32> to vector<8xf32>
    %19 = vector.shape_cast %18 : vector<8xf32> to vector<8x1xf32>
    %20 = vector.broadcast %19 : vector<8x1xf32> to vector<8x8xf32>
    %21 = arith.subf %17, %20 : vector<8x8xf32>
    %22 = math.exp %21 : vector<8x8xf32>
    %cst_8 = arith.constant dense<0.000000e+00> : vector<8xf32>
    %23 = vector.multi_reduction <add>, %22, %cst_8 [1] : vector<8x8xf32> to vector<8xf32>
    %24 = vector.shape_cast %23 : vector<8xf32> to vector<8x1xf32>
    %25 = tpu.reciprocal %24 {approx = true} : vector<8x1xf32> -> vector<8x1xf32>
    %26 = vector.broadcast %25 : vector<8x1xf32> to vector<8x8xf32>
    %27 = arith.mulf %22, %26 : vector<8x8xf32>
    %28 = arith.truncf %27 : vector<8x8xf32> to vector<8x8xbf16>
    %cst_9 = arith.constant dense<0.000000e+00> : vector<8x4xf32>
    %29 = tpu.matmul %28, %16, %cst_9 {dimension_numbers = #tpu.dot_dimension_numbers<[1], [0], [0], [1], [0, 0, 1, 1], [], []>} : vector<8x8xbf16>, vector<8x4xbf16>, vector<8x4xf32> -> vector<8x4xf32>
    %c0_10 = arith.constant 0 : index
    %c0_11 = arith.constant 0 : index
    %c0_12 = arith.constant 0 : index
    %30 = vector.load %arg4[%c0_10, %c0_11, %c0_12] : memref<1x8x16xf32, #tpu.memory_space<vmem>>, vector<1x8x4xf32>
    %31 = vector.shape_cast %30 : vector<1x8x4xf32> to vector<8x4xf32>
    %32 = vector.shape_cast %29 : vector<8x4xf32> to vector<1x8x4xf32>
    tpu.vector_store %arg4[%c0_10, %c0_11, %c0_12], %32 {strides = array<i32>} : memref<1x8x16xf32, #tpu.memory_space<vmem>>, vector<1x8x4xf32>,
    %33 = vector.extract_strided_slice %9 {offsets = [0, 4], sizes = [8, 4], strides = [1, 1]} : vector<8x16xbf16> to vector<8x4xbf16>
    %34 = vector.extract_strided_slice %11 {offsets = [0, 4], sizes = [8, 4], strides = [1, 1]} : vector<8x16xbf16> to vector<8x4xbf16>
    %35 = vector.extract_strided_slice %13 {offsets = [0, 4], sizes = [8, 4], strides = [1, 1]} : vector<8x16xbf16> to vector<8x4xbf16>
    %cst_13 = arith.constant dense<0.000000e+00> : vector<8x8xf32>
    %36 = tpu.matmul %33, %34, %cst_13 {dimension_numbers = #tpu.dot_dimension_numbers<[1], [1], [0], [0], [0, 0, 1, 0], [], []>} : vector<8x4xbf16>, vector<8x4xbf16>, vector<8x8xf32> -> vector<8x8xf32>
    %cst_14 = arith.constant dense<0xFF800000> : vector<8xf32>
    %37 = vector.multi_reduction <maximumf>, %36, %cst_14 [1] : vector<8x8xf32> to vector<8xf32>
    %38 = vector.shape_cast %37 : vector<8xf32> to vector<8x1xf32>
    %39 = vector.broadcast %38 : vector<8x1xf32> to vector<8x8xf32>
    %40 = arith.subf %36, %39 : vector<8x8xf32>
    %41 = math.exp %40 : vector<8x8xf32>
    %cst_15 = arith.constant dense<0.000000e+00> : vector<8xf32>
    %42 = vector.multi_reduction <add>, %41, %cst_15 [1] : vector<8x8xf32> to vector<8xf32>
    %43 = vector.shape_cast %42 : vector<8xf32> to vector<8x1xf32>
    %44 = tpu.reciprocal %43 {approx = true} : vector<8x1xf32> -> vector<8x1xf32>
    %45 = vector.broadcast %44 : vector<8x1xf32> to vector<8x8xf32>
    %46 = arith.mulf %41, %45 : vector<8x8xf32>
    %47 = arith.truncf %46 : vector<8x8xf32> to vector<8x8xbf16>
    %cst_16 = arith.constant dense<0.000000e+00> : vector<8x4xf32>
    %48 = tpu.matmul %47, %35, %cst_16 {dimension_numbers = #tpu.dot_dimension_numbers<[1], [0], [0], [1], [0, 0, 1, 1], [], []>} : vector<8x8xbf16>, vector<8x4xbf16>, vector<8x4xf32> -> vector<8x4xf32>
    %c0_17 = arith.constant 0 : index
    %c0_18 = arith.constant 0 : index
    %c4 = arith.constant 4 : index
    %49 = vector.load %arg4[%c0_17, %c0_18, %c4] : memref<1x8x16xf32, #tpu.memory_space<vmem>>, vector<1x8x4xf32>
    %50 = vector.shape_cast %49 : vector<1x8x4xf32> to vector<8x4xf32>
    %51 = vector.shape_cast %48 : vector<8x4xf32> to vector<1x8x4xf32>
    tpu.vector_store %arg4[%c0_17, %c0_18, %c4], %51 {strides = array<i32>} : memref<1x8x16xf32, #tpu.memory_space<vmem>>, vector<1x8x4xf32>,
    %52 = vector.extract_strided_slice %9 {offsets = [0, 8], sizes = [8, 4], strides = [1, 1]} : vector<8x16xbf16> to vector<8x4xbf16>
    %53 = vector.extract_strided_slice %11 {offsets = [0, 8], sizes = [8, 4], strides = [1, 1]} : vector<8x16xbf16> to vector<8x4xbf16>
    %54 = vector.extract_strided_slice %13 {offsets = [0, 8], sizes = [8, 4], strides = [1, 1]} : vector<8x16xbf16> to vector<8x4xbf16>
    %cst_19 = arith.constant dense<0.000000e+00> : vector<8x8xf32>
    %55 = tpu.matmul %52, %53, %cst_19 {dimension_numbers = #tpu.dot_dimension_numbers<[1], [1], [0], [0], [0, 0, 1, 0], [], []>} : vector<8x4xbf16>, vector<8x4xbf16>, vector<8x8xf32> -> vector<8x8xf32>
    %cst_20 = arith.constant dense<0xFF800000> : vector<8xf32>
    %56 = vector.multi_reduction <maximumf>, %55, %cst_20 [1] : vector<8x8xf32> to vector<8xf32>
    %57 = vector.shape_cast %56 : vector<8xf32> to vector<8x1xf32>
    %58 = vector.broadcast %57 : vector<8x1xf32> to vector<8x8xf32>
    %59 = arith.subf %55, %58 : vector<8x8xf32>
    %60 = math.exp %59 : vector<8x8xf32>
    %cst_21 = arith.constant dense<0.000000e+00> : vector<8xf32>
    %61 = vector.multi_reduction <add>, %60, %cst_21 [1] : vector<8x8xf32> to vector<8xf32>
    %62 = vector.shape_cast %61 : vector<8xf32> to vector<8x1xf32>
    %63 = tpu.reciprocal %62 {approx = true} : vector<8x1xf32> -> vector<8x1xf32>
    %64 = vector.broadcast %63 : vector<8x1xf32> to vector<8x8xf32>
    %65 = arith.mulf %60, %64 : vector<8x8xf32>
    %66 = arith.truncf %65 : vector<8x8xf32> to vector<8x8xbf16>
    %cst_22 = arith.constant dense<0.000000e+00> : vector<8x4xf32>
    %67 = tpu.matmul %66, %54, %cst_22 {dimension_numbers = #tpu.dot_dimension_numbers<[1], [0], [0], [1], [0, 0, 1, 1], [], []>} : vector<8x8xbf16>, vector<8x4xbf16>, vector<8x4xf32> -> vector<8x4xf32>
    %c0_23 = arith.constant 0 : index
    %c0_24 = arith.constant 0 : index
    %c8 = arith.constant 8 : index
    %68 = vector.load %arg4[%c0_23, %c0_24, %c8] : memref<1x8x16xf32, #tpu.memory_space<vmem>>, vector<1x8x4xf32>
    %69 = vector.shape_cast %68 : vector<1x8x4xf32> to vector<8x4xf32>
    %70 = vector.shape_cast %67 : vector<8x4xf32> to vector<1x8x4xf32>
    tpu.vector_store %arg4[%c0_23, %c0_24, %c8], %70 {strides = array<i32>} : memref<1x8x16xf32, #tpu.memory_space<vmem>>, vector<1x8x4xf32>,
    %71 = vector.extract_strided_slice %9 {offsets = [0, 12], sizes = [8, 4], strides = [1, 1]} : vector<8x16xbf16> to vector<8x4xbf16>
    %72 = vector.extract_strided_slice %11 {offsets = [0, 12], sizes = [8, 4], strides = [1, 1]} : vector<8x16xbf16> to vector<8x4xbf16>
    %73 = vector.extract_strided_slice %13 {offsets = [0, 12], sizes = [8, 4], strides = [1, 1]} : vector<8x16xbf16> to vector<8x4xbf16>
    %cst_25 = arith.constant dense<0.000000e+00> : vector<8x8xf32>
    %74 = tpu.matmul %71, %72, %cst_25 {dimension_numbers = #tpu.dot_dimension_numbers<[1], [1], [0], [0], [0, 0, 1, 0], [], []>} : vector<8x4xbf16>, vector<8x4xbf16>, vector<8x8xf32> -> vector<8x8xf32>
    %cst_26 = arith.constant dense<0xFF800000> : vector<8xf32>
    %75 = vector.multi_reduction <maximumf>, %74, %cst_26 [1] : vector<8x8xf32> to vector<8xf32>
    %76 = vector.shape_cast %75 : vector<8xf32> to vector<8x1xf32>
    %77 = vector.broadcast %76 : vector<8x1xf32> to vector<8x8xf32>
    %78 = arith.subf %74, %77 : vector<8x8xf32>
    %79 = math.exp %78 : vector<8x8xf32>
    %cst_27 = arith.constant dense<0.000000e+00> : vector<8xf32>
    %80 = vector.multi_reduction <add>, %79, %cst_27 [1] : vector<8x8xf32> to vector<8xf32>
    %81 = vector.shape_cast %80 : vector<8xf32> to vector<8x1xf32>
    %82 = tpu.reciprocal %81 {approx = true} : vector<8x1xf32> -> vector<8x1xf32>
    %83 = vector.broadcast %82 : vector<8x1xf32> to vector<8x8xf32>
    %84 = arith.mulf %79, %83 : vector<8x8xf32>
    %85 = arith.truncf %84 : vector<8x8xf32> to vector<8x8xbf16>
    %cst_28 = arith.constant dense<0.000000e+00> : vector<8x4xf32>
    %86 = tpu.matmul %85, %73, %cst_28 {dimension_numbers = #tpu.dot_dimension_numbers<[1], [0], [0], [1], [0, 0, 1, 1], [], []>} : vector<8x8xbf16>, vector<8x4xbf16>, vector<8x4xf32> -> vector<8x4xf32>
    %c0_29 = arith.constant 0 : index
    %c0_30 = arith.constant 0 : index
    %c12 = arith.constant 12 : index
    %87 = vector.load %arg4[%c0_29, %c0_30, %c12] : memref<1x8x16xf32, #tpu.memory_space<vmem>>, vector<1x8x4xf32>
    %88 = vector.shape_cast %87 : vector<1x8x4xf32> to vector<8x4xf32>
    %89 = vector.shape_cast %86 : vector<8x4xf32> to vector<1x8x4xf32>
    tpu.vector_store %arg4[%c0_29, %c0_30, %c12], %89 {strides = array<i32>} : memref<1x8x16xf32, #tpu.memory_space<vmem>>, vector<1x8x4xf32>,
    return
  }
  func.func @transform_0(%arg0: i32) -> (i32, i32, i32) {
    %c0_i32 = arith.constant 0 : i32
    %c0_i32_0 = arith.constant 0 : i32
    %c0_i32_1 = arith.constant 0 : i32
    return %arg0, %c0_i32, %c0_i32_0 : i32, i32, i32
  }
  func.func @transform_1(%arg0: i32) -> (i32, i32) {
    %c0_i32 = arith.constant 0 : i32
    %c0_i32_0 = arith.constant 0 : i32
    %c0_i32_1 = arith.constant 0 : i32
    return %c0_i32, %c0_i32_0 : i32, i32
  }
  func.func @transform_2(%arg0: i32) -> (i32, i32) {
    %c0_i32 = arith.constant 0 : i32
    %c0_i32_0 = arith.constant 0 : i32
    %c0_i32_1 = arith.constant 0 : i32
    return %c0_i32, %c0_i32_0 : i32, i32
  }
  func.func @transform_3(%arg0: i32) -> (i32, i32, i32) {
    %c0_i32 = arith.constant 0 : i32
    %c0_i32_0 = arith.constant 0 : i32
    %c0_i32_1 = arith.constant 0 : i32
    return %arg0, %c0_i32, %c0_i32_0 : i32, i32, i32
  }
}

</mosaic_0001>

<llo_original>
// kernel: tpu_custom_call.1
$region0: #{tpu_custom_call.1}
  #allocation0 [shape = 'u32[]', space=smem, size = 0x4, offset = 0x4, fixed_abs, tag = 'smem constant byte address 0x4 - core index']
  #allocation1 [shape = 'u32[144,128]{1,0:T(1,128)}', space=vmem, size = 0x12000, scoped, tag = 'internal scratch']
  %s0 = inlined_call_operand.hbm [shape: f32[2,8,32], index: 0, kind: input, shape index: {}]
  %s1 = inlined_call_operand.hbm [shape: bf16[32,48], index: 1, kind: input, shape index: {}]
  %s2 = inlined_call_operand.vmem [shape: f32[1,48], index: 2, kind: input, shape index: {}]
  %s3 = inlined_call_operand.hbm [shape: f32[2,8,16], index: 3, kind: output, shape index: {}]
  %s4 = sld [smem:[#allocation0]]
  $region53: #{tpu_custom_call.1} parent=0
    _
  %s6 = ssub.s32 1, %s4
  %s7 = scalar_select 0, %s6, %s4
  $region1: #{tpu_custom_call.1} parent=0
    #allocation2 [shape = 'u8[8192]{0}', space=vmem, size = 0x2000, scoped, tag = 'input window, operand 0']
    #allocation3 [shape = 's32[2]{0}', space=sflag, size = 0x8, scoped, tag = 'scoped memory for tpu_custom_call.1']
    #allocation4 [shape = 's32[2]{0}', space=sflag, size = 0x8, scoped, tag = 'scoped memory for tpu_custom_call.1']
    #allocation5 [shape = 'u8[8192]{0}', space=vmem, size = 0x2000, scoped, tag = 'input window, operand 1, single buffered']
    #allocation6 [shape = 's32[1]{0}', space=sflag, size = 0x4, scoped, tag = 'scoped memory for tpu_custom_call.1']
    #allocation7 [shape = 'u8[8192]{0}', space=vmem, size = 0x2000, scoped, tag = 'output window, operand 0']
    %8 = vsyncpa [#allocation3], 0
    %s9 = scalar_lea.sflag [#allocation3], 1
    %10 = vsyncpa %s9, 0
    %11 = vsyncpa [#allocation6], 0
    %12 = vsyncpa [#allocation4], 0
    %s13 = scalar_lea.sflag [#allocation4], 1
    %14 = vsyncpa %s13, 0
    loop: start=0, step=1, limit=4
    $region2: #{tpu_custom_call.1} parent=1 // loop_pre_header
      _
    $region3: #{tpu_custom_call.1} parent=1 // loop_header
      %s16 = sphi 0, %s20
      %p17 = scmp.ge.s32.totalorder %s16, 4
      %s26 = sphi 0, %s28
      %s29 = sphi 0, %s26
      %s30 = sphi 0, %s29
      %s46 = sphi 0, %s30
      %s50 = sphi 0, %s50
      %s52 = sphi 0, %s50
      %s53 = sphi 0, %s52
      %s67 = sphi 0, %s53
      %s71 = sphi 0, %s71
      %s73 = sphi 0, %s71
      %s74 = sphi 0, %s73
      %s88 = sphi 0, %s74
      %s94 = sphi 0, %s96
      %s97 = sphi 0, %s94
      %s98 = sphi 0, %s97
      %s114 = sphi 0, %s98
    $region4: #{tpu_custom_call.1} parent=1 // loop_header_branch
      %19 = sbr.rel (%p17) target = $region8
    $region5: #{tpu_custom_call.1} parent=1 // loop_body
      %s21 = ssub.s32 %s16, 1
      %s22 = ssub.s32 %s16, 2
      %s23 = sadd.s32 %s16, 1
      %s24 = ssub.s32 %s16, %s23
      %p25 = scmp.eq.s32.totalorder %s24, 0
      %s27 = sadd.s32 %s26, 1
      %s28 = scalar_select %p25, %s26, %s27
      %p31 = pneg %p25
      %p32 = scmp.eq.s32.totalorder %s16, 1
      %p33 = por %p31, %p32
      %p34 = scmp.ne.s32.totalorder %s26, %s29
      %p35 = scmp.eq.s32.totalorder %s16, 0
      %p36 = por %p34, %p35
      %p37 = scmp.ne.s32.totalorder %s26, %s29
      %p38 = scmp.eq.s32.totalorder %s21, 1
      %p39 = por %p37, %p38
      %p40 = scmp.ne.s32.totalorder %s29, %s30
      %p41 = scmp.eq.s32.totalorder %s21, 0
      %p42 = por %p40, %p41
      %p43 = scmp.ne.s32.totalorder %s29, %s30
      %p44 = scmp.eq.s32.totalorder %s22, 1
      %p45 = por %p43, %p44
      %p47 = scmp.ne.s32.totalorder %s30, %s46
      %p48 = scmp.eq.s32.totalorder %s22, 0
      %p49 = por %p47, %p48
      %s51 = sadd.s32 %s50, 1
      %p54 = scmp.eq.s32.totalorder %s16, 1
      %p55 = scmp.ne.s32.totalorder %s50, %s52
      %p56 = scmp.eq.s32.totalorder %s16, 0
      %p57 = por %p55, %p56
      %p58 = scmp.ne.s32.totalorder %s50, %s52
      %p59 = scmp.eq.s32.totalorder %s21, 1
      %p60 = por %p58, %p59
      %p61 = scmp.ne.s32.totalorder %s52, %s53
      %p62 = scmp.eq.s32.totalorder %s21, 0
      %p63 = por %p61, %p62
      %p64 = scmp.ne.s32.totalorder %s52, %s53
      %p65 = scmp.eq.s32.totalorder %s22, 1
      %p66 = por %p64, %p65
      %p68 = scmp.ne.s32.totalorder %s53, %s67
      %p69 = scmp.eq.s32.totalorder %s22, 0
      %p70 = por %p68, %p69
      %s72 = sadd.s32 %s71, 1
      %p75 = scmp.eq.s32.totalorder %s16, 1
      %p76 = scmp.ne.s32.totalorder %s71, %s73
      %p77 = scmp.eq.s32.totalorder %s16, 0
      %p78 = por %p76, %p77
      %p79 = scmp.ne.s32.totalorder %s71, %s73
      %p80 = scmp.eq.s32.totalorder %s21, 1
      %p81 = por %p79, %p80
      %p82 = scmp.ne.s32.totalorder %s73, %s74
      %p83 = scmp.eq.s32.totalorder %s21, 0
      %p84 = por %p82, %p83
      %p85 = scmp.ne.s32.totalorder %s73, %s74
      %p86 = scmp.eq.s32.totalorder %s22, 1
      %p87 = por %p85, %p86
      %p89 = scmp.ne.s32.totalorder %s74, %s88
      %p90 = scmp.eq.s32.totalorder %s22, 0
      %p91 = por %p89, %p90
      %s92 = ssub.s32 %s16, %s23
      %p93 = scmp.eq.s32.totalorder %s92, 0
      %s95 = sadd.s32 %s94, 1
      %s96 = scalar_select %p93, %s94, %s95
      %p99 = pneg %p93
      %p100 = scmp.eq.s32.totalorder %s16, 1
      %p101 = por %p99, %p100
      %p102 = scmp.ne.s32.totalorder %s94, %s97
      %p103 = scmp.eq.s32.totalorder %s16, 0
      %p104 = por %p102, %p103
      %p105 = scmp.ne.s32.totalorder %s94, %s97
      %p106 = scmp.eq.s32.totalorder %s21, 1
      %p107 = por %p105, %p106
      %p108 = scmp.ne.s32.totalorder %s97, %s98
      %p109 = scmp.eq.s32.totalorder %s21, 0
      %p110 = por %p108, %p109
      %p111 = scmp.ne.s32.totalorder %s97, %s98
      %p112 = scmp.eq.s32.totalorder %s22, 1
      %p113 = por %p111, %p112
      %p115 = scmp.ne.s32.totalorder %s98, %s114
      %p116 = scmp.eq.s32.totalorder %s22, 0
      %p117 = por %p115, %p116
      %p118 = scmp.le.s32.totalorder 1, %s16
      %p119 = scmp.lt.s32.totalorder %s16, 3
      %p120 = pnand %p118, %p119
      %p121 = pneg %p120
      // Predicated region
      $region9: #{tpu_custom_call.1} parent=5 // pred_check
        _
      $region10: #{tpu_custom_call.1} parent=5 // pred_check_branch
        %123 = sbr.rel (%p120) target = $region12
      $region11: #{tpu_custom_call.1} parent=5 // pred_region
        %s124 = ssub.s32 %s16, 1
        // Predicated region
        $region13: #{tpu_custom_call.1} parent=11 // pred_check
          %p125 = pneg %p63
        $region14: #{tpu_custom_call.1} parent=11 // pred_check_branch
          %127 = sbr.rel (%p125) target = $region16
        $region15: #{tpu_custom_call.1} parent=11 // pred_region
          %s129 = ssub.s32 256, 256
          %130 = vsyncadd [#allocation6], %s129
          %s131 = sshll.u32 [#allocation5], 4
          %s132 = int_to_ptr.vmem [resolvable:$true] %s131
          %137 = dma.hbm_to_vmem [thread:$0]  %s1, 256, %s132, [#allocation6], 64, 64, 4
        $region16: #{tpu_custom_call.1} parent=11 // pred_fallthru
          _
        // Predicated region
        $region17: #{tpu_custom_call.1} parent=11 // pred_check
          %p138 = pneg %p84
        $region18: #{tpu_custom_call.1} parent=11 // pred_check_branch
          %140 = sbr.rel (%p138) target = $region20
        $region19: #{tpu_custom_call.1} parent=11 // pred_region
          _
        $region20: #{tpu_custom_call.1} parent=11 // pred_fallthru
          _
      $region12: #{tpu_custom_call.1} parent=5 // pred_fallthru
        _
      %p141 = scmp.lt.s32.totalorder %s16, 2
      // Predicated region
      $region21: #{tpu_custom_call.1} parent=5 // pred_check
        %p142 = pneg %p141
      $region22: #{tpu_custom_call.1} parent=5 // pred_check_branch
        %144 = sbr.rel (%p142) target = $region24
      $region23: #{tpu_custom_call.1} parent=5 // pred_region
        // Predicated region
        $region25: #{tpu_custom_call.1} parent=23 // pred_check
          %p145 = pneg %p36
        $region26: #{tpu_custom_call.1} parent=23 // pred_check_branch
          %147 = sbr.rel (%p145) target = $region28
        $region27: #{tpu_custom_call.1} parent=23 // pred_region
          %s148 = sand.u32 %s26, 1
          %s149 = scalar_lea.sflag [#allocation3], %s148
          %s150 = sand.u32 %s26, 1
          %s151 = smul.addr %s150, 8
          %s152 = scalar_lea.vmem [#allocation2], %s151
          %s154 = ssub.s32 128, 128
          %155 = vsyncadd %s149, %s154
          %s156 = smul.addr %s16, 128
          %s157 = scalar_lea.hbm %s0, %s156
          %s159 = sshll.u32 %s152, 4
          %s160 = int_to_ptr.vmem [resolvable:$true] %s159
          %162 = dma.hbm_to_vmem [thread:$0]  %s157, 128, %s160, %s149
        $region28: #{tpu_custom_call.1} parent=23 // pred_fallthru
          _
      $region24: #{tpu_custom_call.1} parent=5 // pred_fallthru
        _
      %p163 = scmp.le.s32.totalorder 1, %s16
      %p164 = scmp.lt.s32.totalorder %s16, 3
      %p165 = pnand %p163, %p164
      %p166 = pneg %p165
      // Predicated region
      $region29: #{tpu_custom_call.1} parent=5 // pred_check
        _
      $region30: #{tpu_custom_call.1} parent=5 // pred_check_branch
        %168 = sbr.rel (%p165) target = $region32
      $region31: #{tpu_custom_call.1} parent=5 // pred_region
        %s169 = ssub.s32 %s16, 1
        %s170 = sand.u32 %s29, 1
        %s171 = scalar_lea.sflag [#allocation3], %s170
        %s172 = sand.u32 %s29, 1
        %s173 = smul.addr %s172, 8
        %s174 = scalar_lea.vmem [#allocation2], %s173
        // Predicated region
        $region33: #{tpu_custom_call.1} parent=31 // pred_check
          %p175 = pneg %p42
        $region34: #{tpu_custom_call.1} parent=31 // pred_check_branch
          %177 = sbr.rel (%p175) target = $region36
        $region35: #{tpu_custom_call.1} parent=31 // pred_region
          %178 = dma.done %s171, 128
        $region36: #{tpu_custom_call.1} parent=31 // pred_fallthru
          _
        // Predicated region
        $region37: #{tpu_custom_call.1} parent=31 // pred_check
          %p179 = pneg %p63
        $region38: #{tpu_custom_call.1} parent=31 // pred_check_branch
          %181 = sbr.rel (%p179) target = $region40
        $region39: #{tpu_custom_call.1} parent=31 // pred_region
          %182 = dma.done [#allocation6], 256
        $region40: #{tpu_custom_call.1} parent=31 // pred_fallthru
          _
        %s183 = sand.u32 %s29, 1
        %s184 = scalar_lea.sflag [#allocation3], %s183
        %s185 = sand.u32 %s29, 1
        %s186 = smul.addr %s185, 8
        %s187 = scalar_lea.vmem [#allocation2], %s186
        %p188 = pneg %p42
        %p189 = pneg %p39
        %p190 = pneg %p63
        %p191 = pneg %p60
        %p192 = pneg %p84
        %p193 = pneg %p81
        %p194 = pneg %p110
        %p195 = pneg %p107
        %s196 = sand.u32 %s97, 1
        %s197 = scalar_lea.sflag [#allocation4], %s196
        %s198 = sand.u32 %s97, 1
        %s199 = smul.addr %s198, 8
        %s200 = scalar_lea.vmem [#allocation7], %s199
        %v202 = vld [vmem:[%s174] sm:$0xff]
        %v203 = vpack.c.bf16 %v202, %v202
        %v204 = vld [vmem:[#allocation5] sm:$0xf]
        %v205 = vld [vmem:[#allocation5 + $0x4] sm:$0xf]
        %v206 = vld [vmem:[#allocation5 + $0x8] sm:$0xf]
        %v207 = vld [vmem:[#allocation5 + $0xc] sm:$0xf]
        %v208 = vld [vmem:[%s2] sm:$0x1]
        %v210 = vlaneseq
        %v211 = vshrl.u32 %v210, 7
        %v212 = vsub.s32 0, %v211
        %v213 = vrot.slane %v208, %v212
        %v219 = vunpack.c.l.b16 %v204
        %v220 = vunpack.c.l.b16 %v205
        %v221 = vunpack.c.l.b16 %v206
        %v222 = vunpack.c.l.b16 %v207
        %v223 = vpack.c.b16 %v220, %v219
        %v224 = vpack.c.b16 %v222, %v221
        %vm227 = vcmask 261120
        %v229 = vsel %vm227, %v203, 0
        %231 = vmatprep.subr.bf16.mxu0 0
        %232 = vmatpush1.bf16.msra.mxu0 %v223
        %233 = vmatprep.subr.bf16.mxu0 0
        %234 = vmatpush1.bf16.msra.mxu0 %v224
        %235 = vmatprep.subr.bf16.mxu0 0
        %236 = vmatpush1.bf16.msra.mxu0 0
        %237 = vmatprep.subr.bf16.mxu0 0
        %238 = vmatpush1.bf16.msra.mxu0 0
        %239 = vmatprep.subr.bf16.mxu0 0
        %240 = vmatpush1.bf16.msra.mxu0 0
        %241 = vmatprep.subr.bf16.mxu0 0
        %242 = vmatpush1.bf16.msra.mxu0 0
        %243 = vmatprep.subr.bf16.mxu0 0
        %244 = vmatpush1.bf16.msra.mxu0 0
        %245 = vmatprep.subr.bf16.mxu0 0
        %246 = vmatpush1.bf16.msra.mxu0 0
        %247 = vmatprep.subr.bf16.mxu0 0
        %248 = vmatpush1.bf16.msra.mxu0 0
        %249 = vmatprep.subr.bf16.mxu0 0
        %250 = vmatpush1.bf16.msra.mxu0 0
        %251 = vmatprep.subr.bf16.mxu0 0
        %252 = vmatpush1.bf16.msra.mxu0 0
        %253 = vmatprep.subr.bf16.mxu0 0
        %254 = vmatpush1.bf16.msra.mxu0 0
        %255 = vmatprep.subr.bf16.mxu0 0
        %256 = vmatpush1.bf16.msra.mxu0 0
        %257 = vmatprep.subr.bf16.mxu0 0
        %258 = vmatpush1.bf16.msra.mxu0 0
        %259 = vmatprep.subr.bf16.mxu0 0
        %260 = vmatpush1.bf16.msra.mxu0 0
        %261 = vmatprep.subr.bf16.mxu0 0
        %262 = vmatpush1.bf16.msra.mxu0 0
        %263 = vmatprep.mubr.bf16.mxu0 0
        %264 = vmatmul.mubr.bf16.gmra.mrb[0].mxu0 %v229
        %v265 = vpop.f32.mrb[0].mxu0
        %v266 = vadd.f32 %v213, %v265
        %v267 = vpop.f32.mrb[0].mxu0
        %v268 = vpop.f32.mrb[0].mxu0
        %v269 = vpop.f32.mrb[0].mxu0
        %270 = vdwg.mxu0
        %v271 = vpack.c.bf16 %v266, %v266
        %273 = vrot.lane.b32.xlu0 %v271, 112
        %v274 = vpop.permute.xlu0 %273
        %vm275 = vcmask 31744
        %v277 = vsel %vm275, %v271, 0
        %v280 = vsel %vm275, %v274, 0
        %282 = vmatprep.subr.bf16.mxu0 0
        %283 = vmatpush1.bf16.xpose.msra.mxu0 %v280
        %284 = vmatprep.subr.bf16.mxu0 0
        %285 = vmatpush1.bf16.xpose.msra.mxu0 0
        %286 = vmatprep.subr.bf16.mxu0 0
        %287 = vmatpush1.bf16.xpose.msra.mxu0 0
        %288 = vmatprep.subr.bf16.mxu0 0
        %289 = vmatpush1.bf16.xpose.msra.mxu0 0
        %290 = vmatprep.subr.bf16.mxu0 0
        %291 = vmatpush1.bf16.xpose.msra.mxu0 0
        %292 = vmatprep.subr.bf16.mxu0 0
        %293 = vmatpush1.bf16.xpose.msra.mxu0 0
        %294 = vmatprep.subr.bf16.mxu0 0
        %295 = vmatpush1.bf16.xpose.msra.mxu0 0
        %296 = vmatprep.subr.bf16.mxu0 0
        %297 = vmatpush1.bf16.xpose.msra.mxu0 0
        %298 = vmatprep.subr.bf16.mxu0 0
        %299 = vmatpush1.bf16.xpose.msra.mxu0 0
        %300 = vmatprep.subr.bf16.mxu0 0
        %301 = vmatpush1.bf16.xpose.msra.mxu0 0
        %302 = vmatprep.subr.bf16.mxu0 0
        %303 = vmatpush1.bf16.xpose.msra.mxu0 0
        %304 = vmatprep.subr.bf16.mxu0 0
        %305 = vmatpush1.bf16.xpose.msra.mxu0 0
        %306 = vmatprep.subr.bf16.mxu0 0
        %307 = vmatpush1.bf16.xpose.msra.mxu0 0
        %308 = vmatprep.subr.bf16.mxu0 0
        %309 = vmatpush1.bf16.xpose.msra.mxu0 0
        %310 = vmatprep.subr.bf16.mxu0 0
        %311 = vmatpush1.bf16.xpose.msra.mxu0 0
        %312 = vmatprep.subr.bf16.mxu0 0
        %313 = vmatpush1.bf16.xpose.msra.mxu0 0
        %314 = vmatprep.mubr.bf16.mxu0 0
        %315 = vmatmul.mubr.bf16.gmra.mrb[0].mxu0 %v277
        %v316 = vpop.f32.mrb[0].mxu0
        %v317 = vadd.f32 0.0, %v316
        %v318 = vpop.f32.mrb[0].mxu0
        %v319 = vpop.f32.mrb[0].mxu0
        %v320 = vpop.f32.mrb[0].mxu0
        %321 = vdwg.mxu0
        %vm322 = vcmask 64512
        %v323 = vsel %vm322, %v317, -inf
        %324 = vmax.xlane.f32.xlu0 %v323
        %v325 = vpop.xlane.xlu0 %324
        %v326 = vsub.f32 %v317, %v325
        %v327 = vmul.f32 %v326, 1.442695
        %v328 = vpow.pop %v327
        %v329 = vsel %vm322, %v328, 0.0
        %330 = vadd.xlane.f32.xlu0 %v329
        %v331 = vpop.xlane.xlu0 %330
        %v332 = vrcp.pop %v331
        %v333 = vmul.f32 %v328, %v332
        %v334 = vpack.c.bf16 %v333, %v333
        %335 = vrot.lane.b32.xlu0 %v271, 96
        %v336 = vpop.permute.xlu0 %335
        %v338 = vsel %vm322, %v334, 0
        %vm340 = vcmask 1043456
        %v342 = vsel %vm340, %v336, 0
        %344 = vmatprep.subr.bf16.mxu0 0
        %345 = vmatpush1.bf16.msra.mxu0 %v342
        %346 = vmatprep.subr.bf16.mxu0 0
        %347 = vmatpush1.bf16.msra.mxu0 0
        %348 = vmatprep.subr.bf16.mxu0 0
        %349 = vmatpush1.bf16.msra.mxu0 0
        %350 = vmatprep.subr.bf16.mxu0 0
        %351 = vmatpush1.bf16.msra.mxu0 0
        %352 = vmatprep.subr.bf16.mxu0 0
        %353 = vmatpush1.bf16.msra.mxu0 0
        %354 = vmatprep.subr.bf16.mxu0 0
        %355 = vmatpush1.bf16.msra.mxu0 0
        %356 = vmatprep.subr.bf16.mxu0 0
        %357 = vmatpush1.bf16.msra.mxu0 0
        %358 = vmatprep.subr.bf16.mxu0 0
        %359 = vmatpush1.bf16.msra.mxu0 0
        %360 = vmatprep.subr.bf16.mxu0 0
        %361 = vmatpush1.bf16.msra.mxu0 0
        %362 = vmatprep.subr.bf16.mxu0 0
        %363 = vmatpush1.bf16.msra.mxu0 0
        %364 = vmatprep.subr.bf16.mxu0 0
        %365 = vmatpush1.bf16.msra.mxu0 0
        %366 = vmatprep.subr.bf16.mxu0 0
        %367 = vmatpush1.bf16.msra.mxu0 0
        %368 = vmatprep.subr.bf16.mxu0 0
        %369 = vmatpush1.bf16.msra.mxu0 0
        %370 = vmatprep.subr.bf16.mxu0 0
        %371 = vmatpush1.bf16.msra.mxu0 0
        %372 = vmatprep.subr.bf16.mxu0 0
        %373 = vmatpush1.bf16.msra.mxu0 0
        %374 = vmatprep.subr.bf16.mxu0 0
        %375 = vmatpush1.bf16.msra.mxu0 0
        %376 = vmatprep.mubr.bf16.mxu0 0
        %377 = vmatmul.mubr.bf16.gmra.mrb[0].mxu0 %v338
        %v378 = vpop.f32.mrb[0].mxu0
        %v379 = vadd.f32 0.0, %v378
        %v380 = vpop.f32.mrb[0].mxu0
        %v381 = vpop.f32.mrb[0].mxu0
        %v382 = vpop.f32.mrb[0].mxu0
        %383 = vdwg.mxu0
        %384 = vst.msk [vmem:[%s200] sm:$0xff] %vm275, %v379
        %385 = vrot.lane.b32.xlu0 %v271, 124
        %v386 = vpop.permute.xlu0 %385
        %387 = vrot.lane.b32.xlu0 %v271, 108
        %v388 = vpop.permute.xlu0 %387
        %v390 = vsel %vm275, %v386, 0
        %v393 = vsel %vm275, %v388, 0
        %395 = vmatprep.subr.bf16.mxu0 0
        %396 = vmatpush1.bf16.xpose.msra.mxu0 %v393
        %397 = vmatprep.subr.bf16.mxu0 0
        %398 = vmatpush1.bf16.xpose.msra.mxu0 0
        %399 = vmatprep.subr.bf16.mxu0 0
        %400 = vmatpush1.bf16.xpose.msra.mxu0 0
        %401 = vmatprep.subr.bf16.mxu0 0
        %402 = vmatpush1.bf16.xpose.msra.mxu0 0
        %403 = vmatprep.subr.bf16.mxu0 0
        %404 = vmatpush1.bf16.xpose.msra.mxu0 0
        %405 = vmatprep.subr.bf16.mxu0 0
        %406 = vmatpush1.bf16.xpose.msra.mxu0 0
        %407 = vmatprep.subr.bf16.mxu0 0
        %408 = vmatpush1.bf16.xpose.msra.mxu0 0
        %409 = vmatprep.subr.bf16.mxu0 0
        %410 = vmatpush1.bf16.xpose.msra.mxu0 0
        %411 = vmatprep.subr.bf16.mxu0 0
        %412 = vmatpush1.bf16.xpose.msra.mxu0 0
        %413 = vmatprep.subr.bf16.mxu0 0
        %414 = vmatpush1.bf16.xpose.msra.mxu0 0
        %415 = vmatprep.subr.bf16.mxu0 0
        %416 = vmatpush1.bf16.xpose.msra.mxu0 0
        %417 = vmatprep.subr.bf16.mxu0 0
        %418 = vmatpush1.bf16.xpose.msra.mxu0 0
        %419 = vmatprep.subr.bf16.mxu0 0
        %420 = vmatpush1.bf16.xpose.msra.mxu0 0
        %421 = vmatprep.subr.bf16.mxu0 0
        %422 = vmatpush1.bf16.xpose.msra.mxu0 0
        %423 = vmatprep.subr.bf16.mxu0 0
        %424 = vmatpush1.bf16.xpose.msra.mxu0 0
        %425 = vmatprep.subr.bf16.mxu0 0
        %426 = vmatpush1.bf16.xpose.msra.mxu0 0
        %427 = vmatprep.mubr.bf16.mxu0 0
        %428 = vmatmul.mubr.bf16.gmra.mrb[0].mxu0 %v390
        %v429 = vpop.f32.mrb[0].mxu0
        %v430 = vadd.f32 0.0, %v429
        %v431 = vpop.f32.mrb[0].mxu0
        %v432 = vpop.f32.mrb[0].mxu0
        %v433 = vpop.f32.mrb[0].mxu0
        %434 = vdwg.mxu0
        %v435 = vsel %vm322, %v430, -inf
        %436 = vmax.xlane.f32.xlu0 %v435
        %v437 = vpop.xlane.xlu0 %436
        %v438 = vsub.f32 %v430, %v437
        %v439 = vmul.f32 %v438, 1.442695
        %v440 = vpow.pop %v439
        %v441 = vsel %vm322, %v440, 0.0
        %442 = vadd.xlane.f32.xlu0 %v441
        %v443 = vpop.xlane.xlu0 %442
        %v444 = vrcp.pop %v443
        %v445 = vmul.f32 %v440, %v444
        %v446 = vpack.c.bf16 %v445, %v445
        %447 = vrot.lane.b32.xlu0 %v271, 92
        %v448 = vpop.permute.xlu0 %447
        %v450 = vsel %vm322, %v446, 0
        %v453 = vsel %vm340, %v448, 0
        %455 = vmatprep.subr.bf16.mxu0 0
        %456 = vmatpush1.bf16.msra.mxu0 %v453
        %457 = vmatprep.subr.bf16.mxu0 0
        %458 = vmatpush1.bf16.msra.mxu0 0
        %459 = vmatprep.subr.bf16.mxu0 0
        %460 = vmatpush1.bf16.msra.mxu0 0
        %461 = vmatprep.subr.bf16.mxu0 0
        %462 = vmatpush1.bf16.msra.mxu0 0
        %463 = vmatprep.subr.bf16.mxu0 0
        %464 = vmatpush1.bf16.msra.mxu0 0
        %465 = vmatprep.subr.bf16.mxu0 0
        %466 = vmatpush1.bf16.msra.mxu0 0
        %467 = vmatprep.subr.bf16.mxu0 0
        %468 = vmatpush1.bf16.msra.mxu0 0
        %469 = vmatprep.subr.bf16.mxu0 0
        %470 = vmatpush1.bf16.msra.mxu0 0
        %471 = vmatprep.subr.bf16.mxu0 0
        %472 = vmatpush1.bf16.msra.mxu0 0
        %473 = vmatprep.subr.bf16.mxu0 0
        %474 = vmatpush1.bf16.msra.mxu0 0
        %475 = vmatprep.subr.bf16.mxu0 0
        %476 = vmatpush1.bf16.msra.mxu0 0
        %477 = vmatprep.subr.bf16.mxu0 0
        %478 = vmatpush1.bf16.msra.mxu0 0
        %479 = vmatprep.subr.bf16.mxu0 0
        %480 = vmatpush1.bf16.msra.mxu0 0
        %481 = vmatprep.subr.bf16.mxu0 0
        %482 = vmatpush1.bf16.msra.mxu0 0
        %483 = vmatprep.subr.bf16.mxu0 0
        %484 = vmatpush1.bf16.msra.mxu0 0
        %485 = vmatprep.subr.bf16.mxu0 0
        %486 = vmatpush1.bf16.msra.mxu0 0
        %487 = vmatprep.mubr.bf16.mxu0 0
        %488 = vmatmul.mubr.bf16.gmra.mrb[0].mxu0 %v450
        %v489 = vpop.f32.mrb[0].mxu0
        %v490 = vadd.f32 0.0, %v489
        %v491 = vpop.f32.mrb[0].mxu0
        %v492 = vpop.f32.mrb[0].mxu0
        %v493 = vpop.f32.mrb[0].mxu0
        %494 = vdwg.mxu0
        %496 = vrot.lane.b32.xlu0 %v490, 4
        %v497 = vpop.permute.xlu0 %496
        %vm499 = vcmask 64544
        %500 = vst.msk [vmem:[%s200] sm:$0xff] %vm499, %v497
        %501 = vrot.lane.b32.xlu0 %v271, 120
        %v502 = vpop.permute.xlu0 %501
        %503 = vrot.lane.b32.xlu0 %v271, 104
        %v504 = vpop.permute.xlu0 %503
        %v506 = vsel %vm275, %v502, 0
        %v509 = vsel %vm275, %v504, 0
        %511 = vmatprep.subr.bf16.mxu0 0
        %512 = vmatpush1.bf16.xpose.msra.mxu0 %v509
        %513 = vmatprep.subr.bf16.mxu0 0
        %514 = vmatpush1.bf16.xpose.msra.mxu0 0
        %515 = vmatprep.subr.bf16.mxu0 0
        %516 = vmatpush1.bf16.xpose.msra.mxu0 0
        %517 = vmatprep.subr.bf16.mxu0 0
        %518 = vmatpush1.bf16.xpose.msra.mxu0 0
        %519 = vmatprep.subr.bf16.mxu0 0
        %520 = vmatpush1.bf16.xpose.msra.mxu0 0
        %521 = vmatprep.subr.bf16.mxu0 0
        %522 = vmatpush1.bf16.xpose.msra.mxu0 0
        %523 = vmatprep.subr.bf16.mxu0 0
        %524 = vmatpush1.bf16.xpose.msra.mxu0 0
        %525 = vmatprep.subr.bf16.mxu0 0
        %526 = vmatpush1.bf16.xpose.msra.mxu0 0
        %527 = vmatprep.subr.bf16.mxu0 0
        %528 = vmatpush1.bf16.xpose.msra.mxu0 0
        %529 = vmatprep.subr.bf16.mxu0 0
        %530 = vmatpush1.bf16.xpose.msra.mxu0 0
        %531 = vmatprep.subr.bf16.mxu0 0
        %532 = vmatpush1.bf16.xpose.msra.mxu0 0
        %533 = vmatprep.subr.bf16.mxu0 0
        %534 = vmatpush1.bf16.xpose.msra.mxu0 0
        %535 = vmatprep.subr.bf16.mxu0 0
        %536 = vmatpush1.bf16.xpose.msra.mxu0 0
        %537 = vmatprep.subr.bf16.mxu0 0
        %538 = vmatpush1.bf16.xpose.msra.mxu0 0
        %539 = vmatprep.subr.bf16.mxu0 0
        %540 = vmatpush1.bf16.xpose.msra.mxu0 0
        %541 = vmatprep.subr.bf16.mxu0 0
        %542 = vmatpush1.bf16.xpose.msra.mxu0 0
        %543 = vmatprep.mubr.bf16.mxu0 0
        %544 = vmatmul.mubr.bf16.gmra.mrb[0].mxu0 %v506
        %v545 = vpop.f32.mrb[0].mxu0
        %v546 = vadd.f32 0.0, %v545
        %v547 = vpop.f32.mrb[0].mxu0
        %v548 = vpop.f32.mrb[0].mxu0
        %v549 = vpop.f32.mrb[0].mxu0
        %550 = vdwg.mxu0
        %v551 = vsel %vm322, %v546, -inf
        %552 = vmax.xlane.f32.xlu0 %v551
        %v553 = vpop.xlane.xlu0 %552
        %v554 = vsub.f32 %v546, %v553
        %v555 = vmul.f32 %v554, 1.442695
        %v556 = vpow.pop %v555
        %v557 = vsel %vm322, %v556, 0.0
        %558 = vadd.xlane.f32.xlu0 %v557
        %v559 = vpop.xlane.xlu0 %558
        %v560 = vrcp.pop %v559
        %v561 = vmul.f32 %v556, %v560
        %v562 = vpack.c.bf16 %v561, %v561
        %563 = vrot.lane.b32.xlu0 %v271, 88
        %v564 = vpop.permute.xlu0 %563
        %v566 = vsel %vm322, %v562, 0
        %v569 = vsel %vm340, %v564, 0
        %571 = vmatprep.subr.bf16.mxu0 0
        %572 = vmatpush1.bf16.msra.mxu0 %v569
        %573 = vmatprep.subr.bf16.mxu0 0
        %574 = vmatpush1.bf16.msra.mxu0 0
        %575 = vmatprep.subr.bf16.mxu0 0
        %576 = vmatpush1.bf16.msra.mxu0 0
        %577 = vmatprep.subr.bf16.mxu0 0
        %578 = vmatpush1.bf16.msra.mxu0 0
        %579 = vmatprep.subr.bf16.mxu0 0
        %580 = vmatpush1.bf16.msra.mxu0 0
        %581 = vmatprep.subr.bf16.mxu0 0
        %582 = vmatpush1.bf16.msra.mxu0 0
        %583 = vmatprep.subr.bf16.mxu0 0
        %584 = vmatpush1.bf16.msra.mxu0 0
        %585 = vmatprep.subr.bf16.mxu0 0
        %586 = vmatpush1.bf16.msra.mxu0 0
        %587 = vmatprep.subr.bf16.mxu0 0
        %588 = vmatpush1.bf16.msra.mxu0 0
        %589 = vmatprep.subr.bf16.mxu0 0
        %590 = vmatpush1.bf16.msra.mxu0 0
        %591 = vmatprep.subr.bf16.mxu0 0
        %592 = vmatpush1.bf16.msra.mxu0 0
        %593 = vmatprep.subr.bf16.mxu0 0
        %594 = vmatpush1.bf16.msra.mxu0 0
        %595 = vmatprep.subr.bf16.mxu0 0
        %596 = vmatpush1.bf16.msra.mxu0 0
        %597 = vmatprep.subr.bf16.mxu0 0
        %598 = vmatpush1.bf16.msra.mxu0 0
        %599 = vmatprep.subr.bf16.mxu0 0
        %600 = vmatpush1.bf16.msra.mxu0 0
        %601 = vmatprep.subr.bf16.mxu0 0
        %602 = vmatpush1.bf16.msra.mxu0 0
        %603 = vmatprep.mubr.bf16.mxu0 0
        %604 = vmatmul.mubr.bf16.gmra.mrb[0].mxu0 %v566
        %v605 = vpop.f32.mrb[0].mxu0
        %v606 = vadd.f32 0.0, %v605
        %v607 = vpop.f32.mrb[0].mxu0
        %v608 = vpop.f32.mrb[0].mxu0
        %v609 = vpop.f32.mrb[0].mxu0
        %610 = vdwg.mxu0
        %612 = vrot.lane.b32.xlu0 %v606, 8
        %v613 = vpop.permute.xlu0 %612
        %vm615 = vcmask 97344
        %616 = vst.msk [vmem:[%s200] sm:$0xff] %vm615, %v613
        %617 = vrot.lane.b32.xlu0 %v271, 116
        %v618 = vpop.permute.xlu0 %617
        %619 = vrot.lane.b32.xlu0 %v271, 100
        %v620 = vpop.permute.xlu0 %619
        %v622 = vsel %vm275, %v618, 0
        %v625 = vsel %vm275, %v620, 0
        %627 = vmatprep.subr.bf16.mxu0 0
        %628 = vmatpush1.bf16.xpose.msra.mxu0 %v625
        %629 = vmatprep.subr.bf16.mxu0 0
        %630 = vmatpush1.bf16.xpose.msra.mxu0 0
        %631 = vmatprep.subr.bf16.mxu0 0
        %632 = vmatpush1.bf16.xpose.msra.mxu0 0
        %633 = vmatprep.subr.bf16.mxu0 0
        %634 = vmatpush1.bf16.xpose.msra.mxu0 0
        %635 = vmatprep.subr.bf16.mxu0 0
        %636 = vmatpush1.bf16.xpose.msra.mxu0 0
        %637 = vmatprep.subr.bf16.mxu0 0
        %638 = vmatpush1.bf16.xpose.msra.mxu0 0
        %639 = vmatprep.subr.bf16.mxu0 0
        %640 = vmatpush1.bf16.xpose.msra.mxu0 0
        %641 = vmatprep.subr.bf16.mxu0 0
        %642 = vmatpush1.bf16.xpose.msra.mxu0 0
        %643 = vmatprep.subr.bf16.mxu0 0
        %644 = vmatpush1.bf16.xpose.msra.mxu0 0
        %645 = vmatprep.subr.bf16.mxu0 0
        %646 = vmatpush1.bf16.xpose.msra.mxu0 0
        %647 = vmatprep.subr.bf16.mxu0 0
        %648 = vmatpush1.bf16.xpose.msra.mxu0 0
        %649 = vmatprep.subr.bf16.mxu0 0
        %650 = vmatpush1.bf16.xpose.msra.mxu0 0
        %651 = vmatprep.subr.bf16.mxu0 0
        %652 = vmatpush1.bf16.xpose.msra.mxu0 0
        %653 = vmatprep.subr.bf16.mxu0 0
        %654 = vmatpush1.bf16.xpose.msra.mxu0 0
        %655 = vmatprep.subr.bf16.mxu0 0
        %656 = vmatpush1.bf16.xpose.msra.mxu0 0
        %657 = vmatprep.subr.bf16.mxu0 0
        %658 = vmatpush1.bf16.xpose.msra.mxu0 0
        %659 = vmatprep.mubr.bf16.mxu0 0
        %660 = vmatmul.mubr.bf16.gmra.mrb[0].mxu0 %v622
        %v661 = vpop.f32.mrb[0].mxu0
        %v662 = vadd.f32 0.0, %v661
        %v663 = vpop.f32.mrb[0].mxu0
        %v664 = vpop.f32.mrb[0].mxu0
        %v665 = vpop.f32.mrb[0].mxu0
        %666 = vdwg.mxu0
        %v667 = vsel %vm322, %v662, -inf
        %668 = vmax.xlane.f32.xlu0 %v667
        %v669 = vpop.xlane.xlu0 %668
        %v670 = vsub.f32 %v662, %v669
        %v671 = vmul.f32 %v670, 1.442695
        %v672 = vpow.pop %v671
        %v673 = vsel %vm322, %v672, 0.0
        %674 = vadd.xlane.f32.xlu0 %v673
        %v675 = vpop.xlane.xlu0 %674
        %v676 = vrcp.pop %v675
        %v677 = vmul.f32 %v672, %v676
        %v678 = vpack.c.bf16 %v677, %v677
        %679 = vrot.lane.b32.xlu0 %v271, 84
        %v680 = vpop.permute.xlu0 %679
        %v682 = vsel %vm322, %v678, 0
        %v685 = vsel %vm340, %v680, 0
        %687 = vmatprep.subr.bf16.mxu0 0
        %688 = vmatpush1.bf16.msra.mxu0 %v685
        %689 = vmatprep.subr.bf16.mxu0 0
        %690 = vmatpush1.bf16.msra.mxu0 0
        %691 = vmatprep.subr.bf16.mxu0 0
        %692 = vmatpush1.bf16.msra.mxu0 0
        %693 = vmatprep.subr.bf16.mxu0 0
        %694 = vmatpush1.bf16.msra.mxu0 0
        %695 = vmatprep.subr.bf16.mxu0 0
        %696 = vmatpush1.bf16.msra.mxu0 0
        %697 = vmatprep.subr.bf16.mxu0 0
        %698 = vmatpush1.bf16.msra.mxu0 0
        %699 = vmatprep.subr.bf16.mxu0 0
        %700 = vmatpush1.bf16.msra.mxu0 0
        %701 = vmatprep.subr.bf16.mxu0 0
        %702 = vmatpush1.bf16.msra.mxu0 0
        %703 = vmatprep.subr.bf16.mxu0 0
        %704 = vmatpush1.bf16.msra.mxu0 0
        %705 = vmatprep.subr.bf16.mxu0 0
        %706 = vmatpush1.bf16.msra.mxu0 0
        %707 = vmatprep.subr.bf16.mxu0 0
        %708 = vmatpush1.bf16.msra.mxu0 0
        %709 = vmatprep.subr.bf16.mxu0 0
        %710 = vmatpush1.bf16.msra.mxu0 0
        %711 = vmatprep.subr.bf16.mxu0 0
        %712 = vmatpush1.bf16.msra.mxu0 0
        %713 = vmatprep.subr.bf16.mxu0 0
        %714 = vmatpush1.bf16.msra.mxu0 0
        %715 = vmatprep.subr.bf16.mxu0 0
        %716 = vmatpush1.bf16.msra.mxu0 0
        %717 = vmatprep.subr.bf16.mxu0 0
        %718 = vmatpush1.bf16.msra.mxu0 0
        %719 = vmatprep.mubr.bf16.mxu0 0
        %720 = vmatmul.mubr.bf16.gmra.mrb[0].mxu0 %v682
        %v721 = vpop.f32.mrb[0].mxu0
        %v722 = vadd.f32 0.0, %v721
        %v723 = vpop.f32.mrb[0].mxu0
        %v724 = vpop.f32.mrb[0].mxu0
        %v725 = vpop.f32.mrb[0].mxu0
        %726 = vdwg.mxu0
        %728 = vrot.lane.b32.xlu0 %v722, 12
        %v729 = vpop.permute.xlu0 %728
        %vm731 = vcmask 130144
        %732 = vst.msk [vmem:[%s200] sm:$0xff] %vm731, %v729
        %s733 = sand.u32 %s97, 1
        %s734 = scalar_lea.sflag [#allocation4], %s733
        %s735 = sand.u32 %s97, 1
        %s736 = smul.addr %s735, 8
        %s737 = scalar_lea.vmem [#allocation7], %s736
        // Predicated region
        $region41: #{tpu_custom_call.1} parent=31 // pred_check
          %p738 = pneg %p107
        $region42: #{tpu_custom_call.1} parent=31 // pred_check_branch
          %740 = sbr.rel (%p738) target = $region44
        $region43: #{tpu_custom_call.1} parent=31 // pred_region
          %s742 = ssub.s32 128, 128
          %743 = vsyncadd %s734, %s742
          %s744 = smul.addr %s21, 128
          %s745 = scalar_lea.hbm %s3, %s744
          %s747 = sshll.u32 %s737, 4
          %s748 = int_to_ptr.vmem [resolvable:$true] %s747
          %750 = dma.vmem_to_hbm [thread:$0]  %s748, 128, %s745, %s734
        $region44: #{tpu_custom_call.1} parent=31 // pred_fallthru
          _
      $region32: #{tpu_custom_call.1} parent=5 // pred_fallthru
        _
      %p751 = scmp.le.s32.totalorder 2, %s16
      // Predicated region
      $region45: #{tpu_custom_call.1} parent=5 // pred_check
        %p752 = pneg %p751
      $region46: #{tpu_custom_call.1} parent=5 // pred_check_branch
        %754 = sbr.rel (%p752) target = $region48
      $region47: #{tpu_custom_call.1} parent=5 // pred_region
        %s755 = ssub.s32 %s16, 2
        // Predicated region
        $region49: #{tpu_custom_call.1} parent=47 // pred_check
          %p756 = pneg %p113
        $region50: #{tpu_custom_call.1} parent=47 // pred_check_branch
          %758 = sbr.rel (%p756) target = $region52
        $region51: #{tpu_custom_call.1} parent=47 // pred_region
          %s759 = sand.u32 %s98, 1
          %s760 = scalar_lea.sflag [#allocation4], %s759
          %s761 = sand.u32 %s98, 1
          %s762 = smul.addr %s761, 8
          %s763 = scalar_lea.vmem [#allocation7], %s762
          %764 = dma.done %s760, 128
        $region52: #{tpu_custom_call.1} parent=47 // pred_fallthru
          _
      $region48: #{tpu_custom_call.1} parent=5 // pred_fallthru
        _
    $region6: #{tpu_custom_call.1} parent=1 // loop_footer
      %s20 = sadd.s32 1, %s16
    $region7: #{tpu_custom_call.1} parent=1 // loop_footer_branch
      %15 = sbr.rel target = $region3
    $region8: #{tpu_custom_call.1} parent=1 // loop_exit
      _
    %765 = vsyncpa [#allocation3], 1
    %s766 = scalar_lea.sflag [#allocation3], 1
    %767 = vsyncpa %s766, 1
    %768 = vsyncpa [#allocation6], 1
    %769 = vsyncpa [#allocation4], 1
    %s770 = scalar_lea.sflag [#allocation4], 1
    %771 = vsyncpa %s770, 1

</llo_original>
